<compile_context>
chip_gen: v7x
topology: tpu7x:2x2x1
jax: 0.10.0
libtpu: 0.0.40
codegen_flags: <defaults>
</compile_context>

<pallas_src>
import functools

import jax
import jax.numpy as jnp
from jax import lax
from jax.experimental import pallas as pl
from jax.experimental.pallas import tpu as pltpu


# ----------------------------------------------------------------------------
# Fused Pallas kernel
# ----------------------------------------------------------------------------
def _fused_loss_kernel(labels_ref, query_ref, clip_ref, frame_ref, out_ref, *,
                       margin, mrg, alpha, lamda, ldiv, nq, nv):
    """clip triplet + frame triplet + ldiv * query_diverse_loss -> one scalar."""
    f32 = jnp.float32
    lab = labels_ref[...]                                        # (Q, 1) int32

    # positive mask pm[q, v] = (labels[q] == v), built in-kernel (VPU iota + cmp)
    col = lax.broadcasted_iota(jnp.int32, (nq, nv), 1)
    pm = (col == lab).astype(f32)                                # (Q, V), one-hot rows

    big = f32(2e30)
    inv_nq = f32(1.0 / nq)
    inv_nv = f32(1.0 / nv)

    def triplet(s):
        # hard-negative, hard_pool_size=1 -> deterministic max over non-positives
        masked = s - pm * big                                    # positives -> -2e30
        pos_q = jnp.sum(s * pm, axis=1, keepdims=True)           # (Q, 1)
        neg_q = jnp.max(masked, axis=1, keepdims=True)           # (Q, 1)
        t2v = jnp.sum(jnp.maximum(margin + neg_q - pos_q, 0.0)) * inv_nq
        cnt = jnp.sum(pm, axis=0, keepdims=True)                 # (1, V) queries/video
        pos_v = jnp.sum(s * pm, axis=0, keepdims=True) * pl.reciprocal(cnt, approx=False)
        neg_v = jnp.max(masked, axis=0, keepdims=True)           # (1, V)
        v2t = jnp.sum(jnp.maximum(margin + neg_v - pos_v, 0.0)) * inv_nv
        return t2v + v2t

    clip_trip = triplet(clip_ref[...].astype(f32))
    frame_trip = triplet(frame_ref[...].astype(f32))

    # ---- query diverse loss ----
    x = query_ref[...].astype(f32)                               # (Q, D)
    xn = x * lax.rsqrt(jnp.maximum(jnp.sum(x * x, axis=-1, keepdims=True), 1e-24))
    # cos = xn @ xn.T, contracting last dims of both operands (no XLU transpose)
    cos = lax.dot_general(xn, xn, (((1,), (1,)), ((), ())),
                          preferred_element_type=f32)            # (Q, Q) on MXU
    # same-label mask = pm @ pm.T (one-hot rows -> exact {0,1}), again no transpose
    same = lax.dot_general(pm, pm, (((1,), (1,)), ((), ())),
                           preferred_element_type=f32)           # (Q, Q)
    ri = lax.broadcasted_iota(jnp.int32, (nq, nq), 0)
    ci = lax.broadcasted_iota(jnp.int32, (nq, nq), 1)
    m = same * (ri != ci).astype(f32)                            # N_one_hot - eye

    n_sim = m * jnp.exp(alpha * (cos + mrg))
    focal = m * cos
    base = 1.0 + focal
    lam_i = int(lamda)
    if float(lamda) == float(lam_i) and 1 <= lam_i <= 4:
        powed = base                                             # lamda=2 -> 1 VPU mul
        for _ in range(lam_i - 1):
            powed = powed * base
    else:
        powed = base ** lamda                                    # generic fallback
    qdl = jnp.sum(powed * jnp.log(1.0 + n_sim)) * inv_nq

    out_ref[0, 0] = clip_trip + frame_trip + f32(ldiv) * qdl


# ----------------------------------------------------------------------------
# Wrapper (single pallas_call, grid=(), full-array blocks, SMEM scalar output)
# ----------------------------------------------------------------------------
def fused_loss(clip_scores, frame_scores, query, labels, cfg):
    nq, nv = clip_scores.shape
    d = query.shape[1]
    mrg, alpha, lamda = (float(v) for v in cfg["neg_factor"])
    kern = functools.partial(
        _fused_loss_kernel,
        margin=float(cfg["margin"]), mrg=mrg, alpha=alpha, lamda=lamda,
        ldiv=float(cfg["loss_factor"][2]), nq=nq, nv=nv,
    )
    labels_col = labels.astype(jnp.int32).reshape(nq, 1)
    out = pl.pallas_call(
        kern,
        out_shape=jax.ShapeDtypeStruct((1, 1), jnp.float32),
        in_specs=[
            pl.BlockSpec((nq, 1), lambda: (0, 0)),
            pl.BlockSpec((nq, d), lambda: (0, 0)),
            pl.BlockSpec((nq, nv), lambda: (0, 0)),
            pl.BlockSpec((nq, nv), lambda: (0, 0)),
        ],
        out_specs=pl.BlockSpec(memory_space=pltpu.MemorySpace.SMEM),
    )(
        labels_col,
        query.astype(jnp.float32),
        clip_scores.astype(jnp.float32),
        frame_scores.astype(jnp.float32),
    )
    return out[0, 0]


def loss_forward(input_list, batch, cfg):
    query_labels = batch["text_labels"]
    clip_scale_scores = input_list[0]
    # clip_scale_scores_ = input_list[1]   # used only by clip_nce (see TODO below)
    # label_dict = input_list[2]           # encoded via query_labels here
    frame_scale_scores = input_list[3]
    # frame_scale_scores_ = input_list[4]
    _curv = input_list[5]
    query = input_list[-1]

    if _curv is None:
        loss_pop = 0.0
    else:
        # TODO(synk): hyperbolic L.oxy_angle / L.half_aperture (Lorentz module) not
        # provided; only the `_curv is None` branch of the reference is implemented.
        loss_pop = 0.0

    # TODO(synk): clip_nce criterion source was not provided with the module; its
    # (clip + frame) NCE contributions are omitted (treated as 0) rather than faked.
    clip_nce_loss = 0.0
    frame_nce_loss = 0.0

    # TODO(synk): forward-only kernel; jax.grad would need a custom_vjp / JAX fallback.
    fused = fused_loss(clip_scale_scores, frame_scale_scores, query, query_labels, cfg)
    return clip_nce_loss + frame_nce_loss + fused + loss_pop


# ----------------------------------------------------------------------------
# Pure-JAX reference (correctness sanity check of the fused kernel)
# ----------------------------------------------------------------------------
def _reference_loss(clip_scores, frame_scores, query, labels, cfg):
    margin = cfg["margin"]

    def trip(s):
        nq, nv = s.shape
        pm = labels[:, None] == jnp.arange(nv)[None, :]
        pos_q = jnp.sum(jnp.where(pm, s, 0.0), axis=1)
        neg_q = jnp.max(jnp.where(pm, -1e30, s), axis=1)
        t2v = jnp.sum(jnp.maximum(margin + neg_q - pos_q, 0.0)) / nq
        pos_v = jnp.sum(jnp.where(pm, s, 0.0), axis=0) / jnp.sum(pm, axis=0)
        neg_v = jnp.max(jnp.where(pm, -1e30, s), axis=0)
        v2t = jnp.sum(jnp.maximum(margin + neg_v - pos_v, 0.0)) / nv
        return t2v + v2t

    mrg, alpha, lamda = cfg["neg_factor"]
    nq = query.shape[0]
    xn = query / jnp.maximum(jnp.linalg.norm(query, axis=-1, keepdims=True), 1e-12)
    cos = xn @ xn.T
    m = (labels[:, None] == labels[None, :]) & ~jnp.eye(nq, dtype=bool)
    n_sim = jnp.where(m, jnp.exp(alpha * (cos + mrg)), 0.0)
    focal = jnp.where(m, cos, 0.0)
    qdl = jnp.sum((1.0 + focal) ** lamda * jnp.log(1.0 + n_sim)) / nq
    return trip(clip_scores) + trip(frame_scores) + cfg["loss_factor"][2] * qdl


# ----------------------------------------------------------------------------
if __name__ == "__main__":
    key = jax.random.PRNGKey(0)
    n_videos = 4                 # bs (videos in the batch)
    queries_per_video = 5        # "5*bs" queries
    n_queries = n_videos * queries_per_video   # 20
    d = 32                       # query feature dim

    k1, k2, k3 = jax.random.split(key, 3)
    query = jax.random.normal(k1, (n_queries, d), dtype=jnp.float32)
    clip_scale_scores = jax.random.uniform(
        k2, (n_queries, n_videos), minval=-1.0, maxval=1.0, dtype=jnp.float32
    )
    frame_scale_scores = jax.random.uniform(
        k3, (n_queries, n_videos), minval=-1.0, maxval=1.0, dtype=jnp.float32
    )
    # contiguous label groups, exactly as label_dict in the reference assumes
    text_labels = jnp.repeat(jnp.arange(n_videos, dtype=jnp.int32), queries_per_video)
    label_dict = {
        i: list(range(i * queries_per_video, (i + 1) * queries_per_video))
        for i in range(n_videos)
    }

    cfg = {
        "margin": 0.1,
        "use_hard_negative": True,   # deterministic hard-negative path
        "hard_pool_size": 1,
        "loss_factor": [0.03, 0.04, 0.03, 0.1],
        "neg_factor": [0.1, 4.0, 2.0],   # (mrg, alpha, lamda)
    }

    input_list = [
        clip_scale_scores,   # [0] clip_scale_scores
        clip_scale_scores,   # [1] clip_scale_scores_ (for clip_nce; see TODO)
        label_dict,          # [2]
        frame_scale_scores,  # [3] frame_scale_scores
        frame_scale_scores,  # [4] frame_scale_scores_
        None,                # [5] _curv  -> loss_pop = 0.0 path
        None,                # [6] scale_video_query (unused when _curv is None)
        None,                # [7] scale_video_feat  (unused when _curv is None)
        query,               # [-1] query features
    ]
    batch = {"text_labels": text_labels}

    out = loss_forward(input_list, batch, cfg)
    out = jax.block_until_ready(out)

    ref = _reference_loss(clip_scale_scores, frame_scale_scores, query, text_labels, cfg)
    ref = jax.block_until_ready(ref)
    assert abs(float(out) - float(ref)) <= 1e-3 * max(1.0, abs(float(ref))), (
        float(out), float(ref)
    )
    print("KERNEL_OK")
</pallas_src>

<mosaic_0001>
module attributes {stable_mosaic.version = 11 : i64} {
  func.func @_fused_loss_kernel(%arg0: memref<20x1xi32, #tpu.memory_space<vmem>>, %arg1: memref<20x32xf32, #tpu.memory_space<vmem>>, %arg2: memref<20x4xf32, #tpu.memory_space<vmem>>, %arg3: memref<20x4xf32, #tpu.memory_space<vmem>>, %arg4: memref<1x1xf32, #tpu.memory_space<smem>>) attributes {dimension_semantics = [], scalar_prefetch = 0 : i64, scratch_operands = 0 : i64, tpu.core_type = #tpu.core_type<tc>} {
    %c0 = arith.constant 0 : index
    %c0_0 = arith.constant 0 : index
    %0 = vector.load %arg0[%c0, %c0_0] : memref<20x1xi32, #tpu.memory_space<vmem>>, vector<20x1xi32>
    %1 = tpu.iota {dimensions = array<i32: 1>} : vector<20x4xi32>
    %2 = vector.broadcast %0 : vector<20x1xi32> to vector<20x4xi32>
    %3 = arith.cmpi eq, %1, %2 : vector<20x4xi32>
    %4 = arith.extui %3 : vector<20x4xi1> to vector<20x4xi32>
    %5 = arith.sitofp %4 : vector<20x4xi32> to vector<20x4xf32>
    %c0_1 = arith.constant 0 : index
    %c0_2 = arith.constant 0 : index
    %6 = vector.load %arg2[%c0_1, %c0_2] : memref<20x4xf32, #tpu.memory_space<vmem>>, vector<20x4xf32>
    %cst = arith.constant 2.000000e+30 : f32
    %7 = vector.broadcast %cst : f32 to vector<20x4xf32>
    %8 = arith.mulf %5, %7 : vector<20x4xf32>
    %9 = arith.subf %6, %8 : vector<20x4xf32>
    %10 = arith.mulf %6, %5 : vector<20x4xf32>
    %cst_3 = arith.constant dense<0.000000e+00> : vector<20xf32>
    %11 = vector.multi_reduction <add>, %10, %cst_3 [1] : vector<20x4xf32> to vector<20xf32>
    %12 = vector.shape_cast %11 : vector<20xf32> to vector<20x1xf32>
    %cst_4 = arith.constant dense<0xFF800000> : vector<20xf32>
    %13 = vector.multi_reduction <maximumf>, %9, %cst_4 [1] : vector<20x4xf32> to vector<20xf32>
    %14 = vector.shape_cast %13 : vector<20xf32> to vector<20x1xf32>
    %cst_5 = arith.constant 1.000000e-01 : f32
    %15 = vector.broadcast %cst_5 : f32 to vector<20x1xf32>
    %16 = arith.addf %15, %14 : vector<20x1xf32>
    %17 = arith.subf %16, %12 : vector<20x1xf32>
    %cst_6 = arith.constant 0.000000e+00 : f32
    %18 = vector.broadcast %cst_6 : f32 to vector<20x1xf32>
    %19 = arith.maximumf %17, %18 : vector<20x1xf32>
    %20 = vector.shape_cast %19 : vector<20x1xf32> to vector<1x20x1xf32>
    %cst_7 = arith.constant dense<0.000000e+00> : vector<1xf32>
    %21 = vector.multi_reduction <add>, %20, %cst_7 [1, 2] : vector<1x20x1xf32> to vector<1xf32>
    %22 = vector.shape_cast %21 : vector<1xf32> to vector<1x1x1xf32>
    %23 = vector.extract %22[0, 0, 0] : f32 from vector<1x1x1xf32>
    %cst_8 = arith.constant 5.000000e-02 : f32
    %24 = arith.mulf %23, %cst_8 : f32
    %cst_9 = arith.constant dense<0.000000e+00> : vector<4xf32>
    %25 = vector.multi_reduction <add>, %5, %cst_9 [0] : vector<20x4xf32> to vector<4xf32>
    %26 = vector.shape_cast %25 : vector<4xf32> to vector<1x4xf32>
    %27 = arith.mulf %6, %5 : vector<20x4xf32>
    %cst_10 = arith.constant dense<0.000000e+00> : vector<4xf32>
    %28 = vector.multi_reduction <add>, %27, %cst_10 [0] : vector<20x4xf32> to vector<4xf32>
    %29 = vector.shape_cast %28 : vector<4xf32> to vector<1x4xf32>
    %30 = tpu.reciprocal %26 : vector<1x4xf32> -> vector<1x4xf32>
    %31 = arith.mulf %29, %30 : vector<1x4xf32>
    %cst_11 = arith.constant dense<0xFF800000> : vector<4xf32>
    %32 = vector.multi_reduction <maximumf>, %9, %cst_11 [0] : vector<20x4xf32> to vector<4xf32>
    %33 = vector.shape_cast %32 : vector<4xf32> to vector<1x4xf32>
    %cst_12 = arith.constant 1.000000e-01 : f32
    %34 = vector.broadcast %cst_12 : f32 to vector<1x4xf32>
    %35 = arith.addf %34, %33 : vector<1x4xf32>
    %36 = arith.subf %35, %31 : vector<1x4xf32>
    %cst_13 = arith.constant 0.000000e+00 : f32
    %37 = vector.broadcast %cst_13 : f32 to vector<1x4xf32>
    %38 = arith.maximumf %36, %37 : vector<1x4xf32>
    %39 = vector.shape_cast %38 : vector<1x4xf32> to vector<1x1x4xf32>
    %cst_14 = arith.constant dense<0.000000e+00> : vector<1xf32>
    %40 = vector.multi_reduction <add>, %39, %cst_14 [1, 2] : vector<1x1x4xf32> to vector<1xf32>
    %41 = vector.shape_cast %40 : vector<1xf32> to vector<1x1x1xf32>
    %42 = vector.extract %41[0, 0, 0] : f32 from vector<1x1x1xf32>
    %cst_15 = arith.constant 2.500000e-01 : f32
    %43 = arith.mulf %42, %cst_15 : f32
    %44 = arith.addf %24, %43 : f32
    %c0_16 = arith.constant 0 : index
    %c0_17 = arith.constant 0 : index
    %45 = vector.load %arg3[%c0_16, %c0_17] : memref<20x4xf32, #tpu.memory_space<vmem>>, vector<20x4xf32>
    %cst_18 = arith.constant 2.000000e+30 : f32
    %46 = vector.broadcast %cst_18 : f32 to vector<20x4xf32>
    %47 = arith.mulf %5, %46 : vector<20x4xf32>
    %48 = arith.subf %45, %47 : vector<20x4xf32>
    %49 = arith.mulf %45, %5 : vector<20x4xf32>
    %cst_19 = arith.constant dense<0.000000e+00> : vector<20xf32>
    %50 = vector.multi_reduction <add>, %49, %cst_19 [1] : vector<20x4xf32> to vector<20xf32>
    %51 = vector.shape_cast %50 : vector<20xf32> to vector<20x1xf32>
    %cst_20 = arith.constant dense<0xFF800000> : vector<20xf32>
    %52 = vector.multi_reduction <maximumf>, %48, %cst_20 [1] : vector<20x4xf32> to vector<20xf32>
    %53 = vector.shape_cast %52 : vector<20xf32> to vector<20x1xf32>
    %cst_21 = arith.constant 1.000000e-01 : f32
    %54 = vector.broadcast %cst_21 : f32 to vector<20x1xf32>
    %55 = arith.addf %54, %53 : vector<20x1xf32>
    %56 = arith.subf %55, %51 : vector<20x1xf32>
    %cst_22 = arith.constant 0.000000e+00 : f32
    %57 = vector.broadcast %cst_22 : f32 to vector<20x1xf32>
    %58 = arith.maximumf %56, %57 : vector<20x1xf32>
    %59 = vector.shape_cast %58 : vector<20x1xf32> to vector<1x20x1xf32>
    %cst_23 = arith.constant dense<0.000000e+00> : vector<1xf32>
    %60 = vector.multi_reduction <add>, %59, %cst_23 [1, 2] : vector<1x20x1xf32> to vector<1xf32>
    %61 = vector.shape_cast %60 : vector<1xf32> to vector<1x1x1xf32>
    %62 = vector.extract %61[0, 0, 0] : f32 from vector<1x1x1xf32>
    %cst_24 = arith.constant 5.000000e-02 : f32
    %63 = arith.mulf %62, %cst_24 : f32
    %cst_25 = arith.constant dense<0.000000e+00> : vector<4xf32>
    %64 = vector.multi_reduction <add>, %5, %cst_25 [0] : vector<20x4xf32> to vector<4xf32>
    %65 = vector.shape_cast %64 : vector<4xf32> to vector<1x4xf32>
    %66 = arith.mulf %45, %5 : vector<20x4xf32>
    %cst_26 = arith.constant dense<0.000000e+00> : vector<4xf32>
    %67 = vector.multi_reduction <add>, %66, %cst_26 [0] : vector<20x4xf32> to vector<4xf32>
    %68 = vector.shape_cast %67 : vector<4xf32> to vector<1x4xf32>
    %69 = tpu.reciprocal %65 : vector<1x4xf32> -> vector<1x4xf32>
    %70 = arith.mulf %68, %69 : vector<1x4xf32>
    %cst_27 = arith.constant dense<0xFF800000> : vector<4xf32>
    %71 = vector.multi_reduction <maximumf>, %48, %cst_27 [0] : vector<20x4xf32> to vector<4xf32>
    %72 = vector.shape_cast %71 : vector<4xf32> to vector<1x4xf32>
    %cst_28 = arith.constant 1.000000e-01 : f32
    %73 = vector.broadcast %cst_28 : f32 to vector<1x4xf32>
    %74 = arith.addf %73, %72 : vector<1x4xf32>
    %75 = arith.subf %74, %70 : vector<1x4xf32>
    %cst_29 = arith.constant 0.000000e+00 : f32
    %76 = vector.broadcast %cst_29 : f32 to vector<1x4xf32>
    %77 = arith.maximumf %75, %76 : vector<1x4xf32>
    %78 = vector.shape_cast %77 : vector<1x4xf32> to vector<1x1x4xf32>
    %cst_30 = arith.constant dense<0.000000e+00> : vector<1xf32>
    %79 = vector.multi_reduction <add>, %78, %cst_30 [1, 2] : vector<1x1x4xf32> to vector<1xf32>
    %80 = vector.shape_cast %79 : vector<1xf32> to vector<1x1x1xf32>
    %81 = vector.extract %80[0, 0, 0] : f32 from vector<1x1x1xf32>
    %cst_31 = arith.constant 2.500000e-01 : f32
    %82 = arith.mulf %81, %cst_31 : f32
    %83 = arith.addf %63, %82 : f32
    %c0_32 = arith.constant 0 : index
    %c0_33 = arith.constant 0 : index
    %84 = vector.load %arg1[%c0_32, %c0_33] : memref<20x32xf32, #tpu.memory_space<vmem>>, vector<20x32xf32>
    %85 = arith.mulf %84, %84 : vector<20x32xf32>
    %cst_34 = arith.constant dense<0.000000e+00> : vector<20xf32>
    %86 = vector.multi_reduction <add>, %85, %cst_34 [1] : vector<20x32xf32> to vector<20xf32>
    %87 = vector.shape_cast %86 : vector<20xf32> to vector<20x1xf32>
    %cst_35 = arith.constant 1.000000e-24 : f32
    %88 = vector.broadcast %cst_35 : f32 to vector<20x1xf32>
    %89 = arith.maximumf %87, %88 : vector<20x1xf32>
    %90 = math.rsqrt %89 : vector<20x1xf32>
    %91 = vector.broadcast %90 : vector<20x1xf32> to vector<20x32xf32>
    %92 = arith.mulf %84, %91 : vector<20x32xf32>
    %cst_36 = arith.constant dense<0.000000e+00> : vector<20x20xf32>
    %93 = tpu.matmul %92, %92, %cst_36 {dimension_numbers = #tpu.dot_dimension_numbers<[1], [1], [0], [0], [0, 0, 1, 0], [], []>} : vector<20x32xf32>, vector<20x32xf32>, vector<20x20xf32> -> vector<20x20xf32>
    %cst_37 = arith.constant dense<0.000000e+00> : vector<20x20xf32>
    %94 = tpu.matmul %5, %5, %cst_37 {dimension_numbers = #tpu.dot_dimension_numbers<[1], [1], [0], [0], [0, 0, 1, 0], [], []>} : vector<20x4xf32>, vector<20x4xf32>, vector<20x20xf32> -> vector<20x20xf32>
    %95 = tpu.iota {dimensions = array<i32: 0>} : vector<20x20xi32>
    %96 = tpu.iota {dimensions = array<i32: 1>} : vector<20x20xi32>
    %97 = arith.cmpi ne, %95, %96 : vector<20x20xi32>
    %98 = arith.extui %97 : vector<20x20xi1> to vector<20x20xi32>
    %99 = arith.sitofp %98 : vector<20x20xi32> to vector<20x20xf32>
    %100 = arith.mulf %94, %99 : vector<20x20xf32>
    %cst_38 = arith.constant 1.000000e-01 : f32
    %101 = vector.broadcast %cst_38 : f32 to vector<20x20xf32>
    %102 = arith.addf %93, %101 : vector<20x20xf32>
    %cst_39 = arith.constant 4.000000e+00 : f32
    %103 = vector.broadcast %cst_39 : f32 to vector<20x20xf32>
    %104 = arith.mulf %103, %102 : vector<20x20xf32>
    %105 = math.exp %104 : vector<20x20xf32>
    %106 = arith.mulf %100, %105 : vector<20x20xf32>
    %107 = arith.mulf %100, %93 : vector<20x20xf32>
    %cst_40 = arith.constant 1.000000e+00 : f32
    %108 = vector.broadcast %cst_40 : f32 to vector<20x20xf32>
    %109 = arith.addf %108, %107 : vector<20x20xf32>
    %110 = arith.mulf %109, %109 : vector<20x20xf32>
    %cst_41 = arith.constant 1.000000e+00 : f32
    %111 = vector.broadcast %cst_41 : f32 to vector<20x20xf32>
    %112 = arith.addf %111, %106 : vector<20x20xf32>
    %113 = math.log %112 : vector<20x20xf32>
    %114 = arith.mulf %110, %113 : vector<20x20xf32>
    %115 = vector.shape_cast %114 : vector<20x20xf32> to vector<1x20x20xf32>
    %cst_42 = arith.constant dense<0.000000e+00> : vector<1xf32>
    %116 = vector.multi_reduction <add>, %115, %cst_42 [1, 2] : vector<1x20x20xf32> to vector<1xf32>
    %117 = vector.shape_cast %116 : vector<1xf32> to vector<1x1x1xf32>
    %118 = vector.extract %117[0, 0, 0] : f32 from vector<1x1x1xf32>
    %cst_43 = arith.constant 5.000000e-02 : f32
    %119 = arith.mulf %118, %cst_43 : f32
    %120 = arith.addf %44, %83 : f32
    %cst_44 = arith.constant 3.000000e-02 : f32
    %121 = arith.mulf %cst_44, %119 : f32
    %122 = arith.addf %120, %121 : f32
    %c0_45 = arith.constant 0 : index
    %c0_46 = arith.constant 0 : index
    %123 = memref.load %arg4[%c0_45, %c0_46] : memref<1x1xf32, #tpu.memory_space<smem>>
    memref.store %122, %arg4[%c0_45, %c0_46] : memref<1x1xf32, #tpu.memory_space<smem>>
    return
  }
}

</mosaic_0001>

<llo_original>
// kernel: tpu_custom_call.1
$region0: #{tpu_custom_call.1}
  #allocation0 [shape = 'u32[]', space=smem, size = 0x4, offset = 0x4, fixed_abs, tag = 'smem constant byte address 0x4 - core index']
  #allocation1 [shape = 'u32[144,128]{1,0:T(1,128)}', space=vmem, size = 0x12000, scoped, tag = 'internal scratch']
  %s0 = inlined_call_operand.vmem [shape: s32[20,1], index: 0, kind: input, shape index: {}]
  %s1 = inlined_call_operand.vmem [shape: f32[20,32], index: 1, kind: input, shape index: {}]
  %s2 = inlined_call_operand.vmem [shape: f32[20,4], index: 2, kind: input, shape index: {}]
  %s3 = inlined_call_operand.vmem [shape: f32[20,4], index: 3, kind: input, shape index: {}]
  %s4 = inlined_call_operand.hbm [shape: f32[1,1], index: 4, kind: output, shape index: {}]
  %s5 = sld [smem:[#allocation0]]
  $region26: #{tpu_custom_call.1} parent=0
    _
  %s7 = ssub.s32 1, %s5
  %s8 = scalar_select 0, %s7, %s5
  $region1: #{tpu_custom_call.1} parent=0
    #allocation2 [shape = 'u8[512]{0}', space=smem, size = 0x200, scoped, tag = 'output window, operand 0, single buffered']
    #allocation3 [shape = 's32[1]{0}', space=sflag, size = 0x4, scoped, tag = 'scoped memory for tpu_custom_call.1']
    %9 = vsyncpa [#allocation3], 0
    // Predicated region
    $region2: #{tpu_custom_call.1} parent=1 // pred_check
      _
    $region3: #{tpu_custom_call.1} parent=1 // pred_check_branch
      %11 = sbr.rel (0) target = $region5
    $region4: #{tpu_custom_call.1} parent=1 // pred_region
      _
    $region5: #{tpu_custom_call.1} parent=1 // pred_fallthru
      _
    // Predicated region
    $region6: #{tpu_custom_call.1} parent=1 // pred_check
      _
    $region7: #{tpu_custom_call.1} parent=1 // pred_check_branch
      %13 = sbr.rel (0) target = $region9
    $region8: #{tpu_custom_call.1} parent=1 // pred_region
      _
    $region9: #{tpu_custom_call.1} parent=1 // pred_fallthru
      _
    // Predicated region
    $region10: #{tpu_custom_call.1} parent=1 // pred_check
      _
    $region11: #{tpu_custom_call.1} parent=1 // pred_check_branch
      %15 = sbr.rel (0) target = $region13
    $region12: #{tpu_custom_call.1} parent=1 // pred_region
      _
    $region13: #{tpu_custom_call.1} parent=1 // pred_fallthru
      _
    // Predicated region
    $region14: #{tpu_custom_call.1} parent=1 // pred_check
      _
    $region15: #{tpu_custom_call.1} parent=1 // pred_check_branch
      %17 = sbr.rel (0) target = $region17
    $region16: #{tpu_custom_call.1} parent=1 // pred_region
      _
    $region17: #{tpu_custom_call.1} parent=1 // pred_fallthru
      _
    %v18 = vld [vmem:[%s0] sm:$0xff]
    %v19 = vld [vmem:[%s0 + $0x8] sm:$0xff]
    %v20 = vld [vmem:[%s0 + $0x10] sm:$0xf]
    %v21 = vlaneseq
    %v22 = vand.u32 %v21, 127
    %23 = vset.pattern.permute.xlu0 0
    %24 = vperm.xlu0 %23, %v18
    %v25 = vpop.permute.xlu0 %24
    %26 = vset.pattern.permute.xlu0 0
    %27 = vperm.xlu0 %26, %v19
    %v28 = vpop.permute.xlu0 %27
    %29 = vset.pattern.permute.xlu0 0
    %30 = vperm.xlu0 %29, %v20
    %v31 = vpop.permute.xlu0 %30
    %vm32 = vcmp.eq.s32.totalorder %v22, %v25
    %vm33 = vcmp.eq.s32.totalorder %v22, %v28
    %vm34 = vcmp.eq.s32.totalorder %v22, %v31
    %v35 = vsel %vm32, 1, 0
    %v36 = vsel %vm33, 1, 0
    %v37 = vsel %vm34, 1, 0
    %v38 = vcvt.s32.f32 %v35
    %v39 = vcvt.s32.f32 %v36
    %v40 = vcvt.s32.f32 %v37
    %v41 = vld [vmem:[%s2] sm:$0xff]
    %v42 = vld [vmem:[%s2 + $0x8] sm:$0xff]
    %v43 = vld [vmem:[%s2 + $0x10] sm:$0xf]
    %v44 = vmul.f32 %v38, 2e+30
    %v45 = vmul.f32 %v39, 2e+30
    %v46 = vmul.f32 %v40, 2e+30
    %v47 = vsub.f32 %v41, %v44
    %v48 = vsub.f32 %v42, %v45
    %v49 = vsub.f32 %v43, %v46
    %v50 = vmul.f32 %v41, %v38
    %v51 = vmul.f32 %v42, %v39
    %v52 = vmul.f32 %v43, %v40
    %vm53 = vcmask 31744
    %v54 = vsel %vm53, %v50, 0.0
    %55 = vadd.xlane.f32.xlu0 %v54
    %v56 = vpop.xlane.xlu0 %55
    %v57 = vsel %vm53, %v51, 0.0
    %58 = vadd.xlane.f32.xlu0 %v57
    %v59 = vpop.xlane.xlu0 %58
    %vm60 = vcmask 27648
    %v61 = vsel %vm60, %v52, 0.0
    %62 = vadd.xlane.f32.xlu0 %v61
    %v63 = vpop.xlane.xlu0 %62
    %v64 = vsel %vm53, %v47, -inf
    %65 = vmax.xlane.f32.xlu0 %v64
    %v66 = vpop.xlane.xlu0 %65
    %v67 = vsel %vm53, %v48, -inf
    %68 = vmax.xlane.f32.xlu0 %v67
    %v69 = vpop.xlane.xlu0 %68
    %v70 = vsel %vm60, %v49, -inf
    %71 = vmax.xlane.f32.xlu0 %v70
    %v72 = vpop.xlane.xlu0 %71
    %v73 = vadd.f32 %v66, 0.1
    %v74 = vadd.f32 %v69, 0.1
    %v75 = vadd.f32 %v72, 0.1
    %v76 = vsub.f32 %v73, %v56
    %v77 = vsub.f32 %v74, %v59
    %v78 = vsub.f32 %v75, %v63
    %v79 = vmax.f32 %v76, 0.0
    %v80 = vmax.f32 %v77, 0.0
    %v81 = vmax.f32 %v78, 0.0
    %vm82 = vcmask 7168
    %v83 = vsel %vm82, %v79, 0.0
    %v84 = vsel %vm82, %v80, 0.0
    %v85 = vadd.f32 %v83, %v84
    %vm86 = vcmask 3072
    %v87 = vsel %vm86, %v81, 0.0
    %v88 = vadd.f32 %v85, %v87
    %89 = vadd.xlane.f32.xlu0 %v88
    %v90 = vpop.xlane.xlu0 %89
    %v91 = vrot.slane %v90, 4
    %v92 = vadd.f32 %v90, %v91
    %v93 = vrot.slane %v92, 2
    %v94 = vadd.f32 %v92, %v93
    %v95 = vrot.slane %v94, 1
    %v96 = vadd.f32 %v94, %v95
    %s97 = vtos %v96
    %s98 = smul.f32 %s97, 0.05
    %v99 = vsel %vm53, %v38, 0.0
    %v100 = vsel %vm53, %v39, 0.0
    %v101 = vadd.f32 %v99, %v100
    %v102 = vsel %vm60, %v40, 0.0
    %v103 = vadd.f32 %v101, %v102
    %v104 = vrot.slane %v103, 4
    %v105 = vadd.f32 %v103, %v104
    %v106 = vrot.slane %v105, 2
    %v107 = vadd.f32 %v105, %v106
    %v108 = vrot.slane %v107, 1
    %v109 = vadd.f32 %v107, %v108
    %v110 = vadd.f32 %v54, %v57
    %v111 = vadd.f32 %v110, %v61
    %v112 = vrot.slane %v111, 4
    %v113 = vadd.f32 %v111, %v112
    %v114 = vrot.slane %v113, 2
    %v115 = vadd.f32 %v113, %v114
    %v116 = vrot.slane %v115, 1
    %v117 = vadd.f32 %v115, %v116
    %v118 = vrcp.pop %v109
    %v119 = vmul.f32 %v117, %v118
    %v120 = vmax.f32 %v64, %v67
    %v121 = vmax.f32 %v120, %v70
    %v122 = vrot.slane %v121, 4
    %v123 = vmax.f32 %v121, %v122
    %v124 = vrot.slane %v123, 2
    %v125 = vmax.f32 %v123, %v124
    %v126 = vrot.slane %v125, 1
    %v127 = vmax.f32 %v125, %v126
    %v128 = vadd.f32 %v127, 0.1
    %v129 = vsub.f32 %v128, %v119
    %v130 = vmax.f32 %v129, 0.0
    %vm131 = vcmask 24576
    %v132 = vsel %vm131, %v130, 0.0
    %133 = vadd.xlane.f32.xlu0 %v132
    %v134 = vpop.xlane.xlu0 %133
    %v135 = vrot.slane %v134, 4
    %v136 = vadd.f32 %v134, %v135
    %v137 = vrot.slane %v136, 2
    %v138 = vadd.f32 %v136, %v137
    %v139 = vrot.slane %v138, 1
    %v140 = vadd.f32 %v138, %v139
    %s141 = vtos %v140
    %s142 = smul.f32 %s141, 0.25
    %s143 = sadd.f32 %s98, %s142
    %v144 = vld [vmem:[%s3] sm:$0xff]
    %v145 = vld [vmem:[%s3 + $0x8] sm:$0xff]
    %v146 = vld [vmem:[%s3 + $0x10] sm:$0xf]
    %v147 = vsub.f32 %v144, %v44
    %v148 = vsub.f32 %v145, %v45
    %v149 = vsub.f32 %v146, %v46
    %v150 = vmul.f32 %v144, %v38
    %v151 = vmul.f32 %v145, %v39
    %v152 = vmul.f32 %v146, %v40
    %v153 = vsel %vm53, %v150, 0.0
    %154 = vadd.xlane.f32.xlu0 %v153
    %v155 = vpop.xlane.xlu0 %154
    %v156 = vsel %vm53, %v151, 0.0
    %157 = vadd.xlane.f32.xlu0 %v156
    %v158 = vpop.xlane.xlu0 %157
    %v159 = vsel %vm60, %v152, 0.0
    %160 = vadd.xlane.f32.xlu0 %v159
    %v161 = vpop.xlane.xlu0 %160
    %v162 = vsel %vm53, %v147, -inf
    %163 = vmax.xlane.f32.xlu0 %v162
    %v164 = vpop.xlane.xlu0 %163
    %v165 = vsel %vm53, %v148, -inf
    %166 = vmax.xlane.f32.xlu0 %v165
    %v167 = vpop.xlane.xlu0 %166
    %v168 = vsel %vm60, %v149, -inf
    %169 = vmax.xlane.f32.xlu0 %v168
    %v170 = vpop.xlane.xlu0 %169
    %v171 = vadd.f32 %v164, 0.1
    %v172 = vadd.f32 %v167, 0.1
    %v173 = vadd.f32 %v170, 0.1
    %v174 = vsub.f32 %v171, %v155
    %v175 = vsub.f32 %v172, %v158
    %v176 = vsub.f32 %v173, %v161
    %v177 = vmax.f32 %v174, 0.0
    %v178 = vmax.f32 %v175, 0.0
    %v179 = vmax.f32 %v176, 0.0
    %v180 = vsel %vm82, %v177, 0.0
    %v181 = vsel %vm82, %v178, 0.0
    %v182 = vadd.f32 %v180, %v181
    %v183 = vsel %vm86, %v179, 0.0
    %v184 = vadd.f32 %v182, %v183
    %185 = vadd.xlane.f32.xlu0 %v184
    %v186 = vpop.xlane.xlu0 %185
    %v187 = vrot.slane %v186, 4
    %v188 = vadd.f32 %v186, %v187
    %v189 = vrot.slane %v188, 2
    %v190 = vadd.f32 %v188, %v189
    %v191 = vrot.slane %v190, 1
    %v192 = vadd.f32 %v190, %v191
    %s193 = vtos %v192
    %s194 = smul.f32 %s193, 0.05
    %v195 = vadd.f32 %v153, %v156
    %v196 = vadd.f32 %v195, %v159
    %v197 = vrot.slane %v196, 4
    %v198 = vadd.f32 %v196, %v197
    %v199 = vrot.slane %v198, 2
    %v200 = vadd.f32 %v198, %v199
    %v201 = vrot.slane %v200, 1
    %v202 = vadd.f32 %v200, %v201
    %v203 = vmul.f32 %v202, %v118
    %v204 = vmax.f32 %v162, %v165
    %v205 = vmax.f32 %v204, %v168
    %v206 = vrot.slane %v205, 4
    %v207 = vmax.f32 %v205, %v206
    %v208 = vrot.slane %v207, 2
    %v209 = vmax.f32 %v207, %v208
    %v210 = vrot.slane %v209, 1
    %v211 = vmax.f32 %v209, %v210
    %v212 = vadd.f32 %v211, 0.1
    %v213 = vsub.f32 %v212, %v203
    %v214 = vmax.f32 %v213, 0.0
    %v215 = vsel %vm131, %v214, 0.0
    %216 = vadd.xlane.f32.xlu0 %v215
    %v217 = vpop.xlane.xlu0 %216
    %v218 = vrot.slane %v217, 4
    %v219 = vadd.f32 %v217, %v218
    %v220 = vrot.slane %v219, 2
    %v221 = vadd.f32 %v219, %v220
    %v222 = vrot.slane %v221, 1
    %v223 = vadd.f32 %v221, %v222
    %s224 = vtos %v223
    %s225 = smul.f32 %s224, 0.25
    %s226 = sadd.f32 %s194, %s225
    %v227 = vld [vmem:[%s1] sm:$0xff]
    %v228 = vld [vmem:[%s1 + $0x8] sm:$0xff]
    %v229 = vld [vmem:[%s1 + $0x10] sm:$0xf]
    %v230 = vmul.f32 %v227, %v227
    %v231 = vmul.f32 %v228, %v228
    %v232 = vmul.f32 %v229, %v229
    %vm233 = vcmask 261120
    %v234 = vsel %vm233, %v230, 0.0
    %235 = vadd.xlane.f32.xlu0 %v234
    %v236 = vpop.xlane.xlu0 %235
    %v237 = vsel %vm233, %v231, 0.0
    %238 = vadd.xlane.f32.xlu0 %v237
    %v239 = vpop.xlane.xlu0 %238
    %vm240 = vcmask 257024
    %v241 = vsel %vm240, %v232, 0.0
    %242 = vadd.xlane.f32.xlu0 %v241
    %v243 = vpop.xlane.xlu0 %242
    %v244 = vmax.f32 %v236, 1e-24
    %v245 = vmax.f32 %v239, 1e-24
    %v246 = vmax.f32 %v243, 1e-24
    %v247 = vrsqrt.pop %v244
    %v248 = vrsqrt.pop %v245
    %v249 = vrsqrt.pop %v246
    %v250 = vmul.f32 %v227, %v247
    %v251 = vmul.f32 %v228, %v248
    %v252 = vmul.f32 %v229, %v249
    %v254 = vsel %vm233, %v250, 0
    %v257 = vsel %vm233, %v251, 0
    %v260 = vsel %vm233, %v252, 0
    %262 = vmatprep.subr.mxu0 0.0
    %263 = vmatpush1.xpose.msra.mxu0 %v254
    %264 = vmatprep.subr.mxu0 0.0
    %265 = vmatpush1.xpose.msra.mxu0 %v257
    %266 = vmatprep.subr.mxu0 0.0
    %267 = vmatpush1.xpose.msra.mxu0 %v260
    %268 = vmatprep.subr.mxu0 0.0
    %269 = vmatpush1.xpose.msra.mxu0 0.0
    %270 = vmatprep.subr.mxu0 0.0
    %271 = vmatpush1.xpose.msra.mxu0 0.0
    %272 = vmatprep.subr.mxu0 0.0
    %273 = vmatpush1.xpose.msra.mxu0 0.0
    %274 = vmatprep.subr.mxu0 0.0
    %275 = vmatpush1.xpose.msra.mxu0 0.0
    %276 = vmatprep.subr.mxu0 0.0
    %277 = vmatpush1.xpose.msra.mxu0 0.0
    %278 = vmatprep.subr.mxu0 0.0
    %279 = vmatpush1.xpose.msra.mxu0 0.0
    %280 = vmatprep.subr.mxu0 0.0
    %281 = vmatpush1.xpose.msra.mxu0 0.0
    %282 = vmatprep.subr.mxu0 0.0
    %283 = vmatpush1.xpose.msra.mxu0 0.0
    %284 = vmatprep.subr.mxu0 0.0
    %285 = vmatpush1.xpose.msra.mxu0 0.0
    %286 = vmatprep.subr.mxu0 0.0
    %287 = vmatpush1.xpose.msra.mxu0 0.0
    %288 = vmatprep.subr.mxu0 0.0
    %289 = vmatpush1.xpose.msra.mxu0 0.0
    %290 = vmatprep.subr.mxu0 0.0
    %291 = vmatpush1.xpose.msra.mxu0 0.0
    %292 = vmatprep.subr.mxu0 0.0
    %293 = vmatpush1.xpose.msra.mxu0 0.0
    %294 = vmatprep.subr.mxu0 0.0
    %295 = vmatpush1.xpose.msra.mxu0 0.0
    %296 = vmatprep.subr.mxu0 0.0
    %297 = vmatpush1.xpose.msra.mxu0 0.0
    %298 = vmatprep.subr.mxu0 0.0
    %299 = vmatpush1.xpose.msra.mxu0 0.0
    %300 = vmatprep.subr.mxu0 0.0
    %301 = vmatpush1.xpose.msra.mxu0 0.0
    %302 = vmatprep.subr.mxu0 0.0
    %303 = vmatpush1.xpose.msra.mxu0 0.0
    %304 = vmatprep.subr.mxu0 0.0
    %305 = vmatpush1.xpose.msra.mxu0 0.0
    %306 = vmatprep.subr.mxu0 0.0
    %307 = vmatpush1.xpose.msra.mxu0 0.0
    %308 = vmatprep.subr.mxu0 0.0
    %309 = vmatpush1.xpose.msra.mxu0 0.0
    %310 = vmatprep.subr.mxu0 0.0
    %311 = vmatpush1.xpose.msra.mxu0 0.0
    %312 = vmatprep.subr.mxu0 0.0
    %313 = vmatpush1.xpose.msra.mxu0 0.0
    %314 = vmatprep.subr.mxu0 0.0
    %315 = vmatpush1.xpose.msra.mxu0 0.0
    %316 = vmatprep.subr.mxu0 0.0
    %317 = vmatpush1.xpose.msra.mxu0 0.0
    %318 = vmatprep.subr.mxu0 0.0
    %319 = vmatpush1.xpose.msra.mxu0 0.0
    %320 = vmatprep.subr.mxu0 0.0
    %321 = vmatpush1.xpose.msra.mxu0 0.0
    %322 = vmatprep.subr.mxu0 0.0
    %323 = vmatpush1.xpose.msra.mxu0 0.0
    %324 = vmatprep.subr.mxu0 0.0
    %325 = vmatpush1.xpose.msra.mxu0 0.0
    %326 = vmatprep.mubr.f32.mxu0 0.0
    %327 = vmatmul.mubr.f32.gmra.mrb[0].mxu0 %v254
    %v328 = vpop.f32.mrb[0].mxu0
    %v329 = vadd.f32 0.0, %v328
    %v330 = vpop.f32.mrb[0].mxu0
    %331 = vmatprep.mubr.f32.mxu0 0.0
    %332 = vmatmul.mubr.f32.gmra.mrb[0].mxu0 %v257
    %v333 = vpop.f32.mrb[0].mxu0
    %v334 = vadd.f32 0.0, %v333
    %v335 = vpop.f32.mrb[0].mxu0
    %336 = vmatprep.mubr.f32.mxu0 0.0
    %337 = vmatmul.mubr.f32.gmra.mrb[0].mxu0 %v260
    %v338 = vpop.f32.mrb[0].mxu0
    %v339 = vadd.f32 0.0, %v338
    %v340 = vpop.f32.mrb[0].mxu0
    %341 = vdwg.mxu0
    %v343 = vsel %vm53, %v38, 0
    %v346 = vsel %vm53, %v39, 0
    %v349 = vsel %vm53, %v40, 0
    %351 = vmatprep.subr.mxu0 0.0
    %352 = vmatpush1.xpose.msra.mxu0 %v343
    %353 = vmatprep.subr.mxu0 0.0
    %354 = vmatpush1.xpose.msra.mxu0 %v346
    %355 = vmatprep.subr.mxu0 0.0
    %356 = vmatpush1.xpose.msra.mxu0 %v349
    %357 = vmatprep.subr.mxu0 0.0
    %358 = vmatpush1.xpose.msra.mxu0 0.0
    %359 = vmatprep.subr.mxu0 0.0
    %360 = vmatpush1.xpose.msra.mxu0 0.0
    %361 = vmatprep.subr.mxu0 0.0
    %362 = vmatpush1.xpose.msra.mxu0 0.0
    %363 = vmatprep.subr.mxu0 0.0
    %364 = vmatpush1.xpose.msra.mxu0 0.0
    %365 = vmatprep.subr.mxu0 0.0
    %366 = vmatpush1.xpose.msra.mxu0 0.0
    %367 = vmatprep.subr.mxu0 0.0
    %368 = vmatpush1.xpose.msra.mxu0 0.0
    %369 = vmatprep.subr.mxu0 0.0
    %370 = vmatpush1.xpose.msra.mxu0 0.0
    %371 = vmatprep.subr.mxu0 0.0
    %372 = vmatpush1.xpose.msra.mxu0 0.0
    %373 = vmatprep.subr.mxu0 0.0
    %374 = vmatpush1.xpose.msra.mxu0 0.0
    %375 = vmatprep.subr.mxu0 0.0
    %376 = vmatpush1.xpose.msra.mxu0 0.0
    %377 = vmatprep.subr.mxu0 0.0
    %378 = vmatpush1.xpose.msra.mxu0 0.0
    %379 = vmatprep.subr.mxu0 0.0
    %380 = vmatpush1.xpose.msra.mxu0 0.0
    %381 = vmatprep.subr.mxu0 0.0
    %382 = vmatpush1.xpose.msra.mxu0 0.0
    %383 = vmatprep.subr.mxu0 0.0
    %384 = vmatpush1.xpose.msra.mxu0 0.0
    %385 = vmatprep.subr.mxu0 0.0
    %386 = vmatpush1.xpose.msra.mxu0 0.0
    %387 = vmatprep.subr.mxu0 0.0
    %388 = vmatpush1.xpose.msra.mxu0 0.0
    %389 = vmatprep.subr.mxu0 0.0
    %390 = vmatpush1.xpose.msra.mxu0 0.0
    %391 = vmatprep.subr.mxu0 0.0
    %392 = vmatpush1.xpose.msra.mxu0 0.0
    %393 = vmatprep.subr.mxu0 0.0
    %394 = vmatpush1.xpose.msra.mxu0 0.0
    %395 = vmatprep.subr.mxu0 0.0
    %396 = vmatpush1.xpose.msra.mxu0 0.0
    %397 = vmatprep.subr.mxu0 0.0
    %398 = vmatpush1.xpose.msra.mxu0 0.0
    %399 = vmatprep.subr.mxu0 0.0
    %400 = vmatpush1.xpose.msra.mxu0 0.0
    %401 = vmatprep.subr.mxu0 0.0
    %402 = vmatpush1.xpose.msra.mxu0 0.0
    %403 = vmatprep.subr.mxu0 0.0
    %404 = vmatpush1.xpose.msra.mxu0 0.0
    %405 = vmatprep.subr.mxu0 0.0
    %406 = vmatpush1.xpose.msra.mxu0 0.0
    %407 = vmatprep.subr.mxu0 0.0
    %408 = vmatpush1.xpose.msra.mxu0 0.0
    %409 = vmatprep.subr.mxu0 0.0
    %410 = vmatpush1.xpose.msra.mxu0 0.0
    %411 = vmatprep.subr.mxu0 0.0
    %412 = vmatpush1.xpose.msra.mxu0 0.0
    %413 = vmatprep.subr.mxu0 0.0
    %414 = vmatpush1.xpose.msra.mxu0 0.0
    %415 = vmatprep.mubr.f32.mxu0 0.0
    %416 = vmatmul.mubr.f32.gmra.mrb[0].mxu0 %v343
    %v417 = vpop.f32.mrb[0].mxu0
    %v418 = vadd.f32 0.0, %v417
    %v419 = vpop.f32.mrb[0].mxu0
    %420 = vmatprep.mubr.f32.mxu0 0.0
    %421 = vmatmul.mubr.f32.gmra.mrb[0].mxu0 %v346
    %v422 = vpop.f32.mrb[0].mxu0
    %v423 = vadd.f32 0.0, %v422
    %v424 = vpop.f32.mrb[0].mxu0
    %425 = vmatprep.mubr.f32.mxu0 0.0
    %426 = vmatmul.mubr.f32.gmra.mrb[0].mxu0 %v349
    %v427 = vpop.f32.mrb[0].mxu0
    %v428 = vadd.f32 0.0, %v427
    %v429 = vpop.f32.mrb[0].mxu0
    %430 = vdwg.mxu0
    %v431 = vlaneseq
    %v432 = vshrl.u32 %v431, 7
    %v433 = vadd.s32 %v432, 8
    %v434 = vadd.s32 %v432, 16
    %vm435 = vcmp.ne.s32.totalorder %v432, %v22
    %vm436 = vcmp.ne.s32.totalorder %v433, %v22
    %vm437 = vcmp.ne.s32.totalorder %v434, %v22
    %v438 = vsel %vm435, 1, 0
    %v439 = vsel %vm436, 1, 0
    %v440 = vsel %vm437, 1, 0
    %v441 = vcvt.s32.f32 %v438
    %v442 = vcvt.s32.f32 %v439
    %v443 = vcvt.s32.f32 %v440
    %v444 = vmul.f32 %v418, %v441
    %v445 = vmul.f32 %v423, %v442
    %v446 = vmul.f32 %v428, %v443
    %v447 = vadd.f32 %v329, 0.1
    %v448 = vadd.f32 %v334, 0.1
    %v449 = vadd.f32 %v339, 0.1
    %v450 = vmul.f32 %v447, 4.0
    %v451 = vmul.f32 %v448, 4.0
    %v452 = vmul.f32 %v449, 4.0
    %v453 = vmul.f32 %v450, 1.442695
    %v454 = vpow.pop %v453
    %v455 = vmul.f32 %v451, 1.442695
    %v456 = vpow.pop %v455
    %v457 = vmul.f32 %v452, 1.442695
    %v458 = vpow.pop %v457
    %v459 = vmul.f32 %v444, %v454
    %v460 = vmul.f32 %v445, %v456
    %v461 = vmul.f32 %v446, %v458
    %v462 = vmul.f32 %v444, %v329
    %v463 = vmul.f32 %v445, %v334
    %v464 = vmul.f32 %v446, %v339
    %v465 = vadd.f32 %v462, 1.0
    %v466 = vadd.f32 %v463, 1.0
    %v467 = vadd.f32 %v464, 1.0
    %v468 = vmul.f32 %v465, %v465
    %v469 = vmul.f32 %v466, %v466
    %v470 = vmul.f32 %v467, %v467
    %v471 = vadd.f32 %v459, 1.0
    %v472 = vadd.f32 %v460, 1.0
    %v473 = vadd.f32 %v461, 1.0
    %v474 = vlog2.pop %v471
    %v475 = vmul.f32 %v474, 0.6931472
    %v476 = vlog2.pop %v472
    %v477 = vmul.f32 %v476, 0.6931472
    %v478 = vlog2.pop %v473
    %v479 = vmul.f32 %v478, 0.6931472
    %v480 = vmul.f32 %v468, %v475
    %v481 = vmul.f32 %v469, %v477
    %v482 = vmul.f32 %v470, %v479
    %vm483 = vcmask 162816
    %v484 = vsel %vm483, %v480, 0.0
    %v485 = vsel %vm483, %v481, 0.0
    %v486 = vadd.f32 %v484, %v485
    %vm487 = vcmask 158720
    %v488 = vsel %vm487, %v482, 0.0
    %v489 = vadd.f32 %v486, %v488
    %490 = vadd.xlane.f32.xlu0 %v489
    %v491 = vpop.xlane.xlu0 %490
    %v492 = vrot.slane %v491, 4
    %v493 = vadd.f32 %v491, %v492
    %v494 = vrot.slane %v493, 2
    %v495 = vadd.f32 %v493, %v494
    %v496 = vrot.slane %v495, 1
    %v497 = vadd.f32 %v495, %v496
    %s498 = vtos %v497
    %s499 = smul.f32 %s498, 0.05
    %s500 = sadd.f32 %s143, %s226
    %s501 = smul.f32 %s499, 0.03
    %s502 = sadd.f32 %s500, %s501
    %s503 = scalar_lea.smem [#allocation2], 0
    %504 = sst [smem:[%s503]] %s502
    // Predicated region
    $region18: #{tpu_custom_call.1} parent=1 // pred_check
      _
    $region19: #{tpu_custom_call.1} parent=1 // pred_check_branch
      %506 = sbr.rel (0) target = $region21
    $region20: #{tpu_custom_call.1} parent=1 // pred_region
      %s508 = ssub.s32 16, 16
      %509 = vsyncadd [#allocation3], %s508
      %512 = dma.smem_to_hbm [#allocation2], 16, %s4, [#allocation3]
    $region21: #{tpu_custom_call.1} parent=1 // pred_fallthru
      _
    // Predicated region
    $region22: #{tpu_custom_call.1} parent=1 // pred_check
      _
    $region23: #{tpu_custom_call.1} parent=1 // pred_check_branch
      %514 = sbr.rel (0) target = $region25
    $region24: #{tpu_custom_call.1} parent=1 // pred_region
      %515 = dma.done [#allocation3], 16
    $region25: #{tpu_custom_call.1} parent=1 // pred_fallthru
      _
    %516 = sfence
    %517 = vsyncpa [#allocation3], 1

</llo_original>
